<compile_context>
chip_gen: v5e
topology: v5e:2x2
jax: 0.10.0
libtpu: 0.0.40
codegen_flags: <defaults>
</compile_context>

<pallas_src>
import jax
import jax.numpy as jnp
from jax.experimental import pallas as pl
from jax.experimental.pallas import tpu as pltpu


def _round_up(v, m):
    return ((v + m - 1) // m) * m


def _rbf_kernel(w_ref, x_ref, y_ref, o_ref):
    # w_ref: (D, 1) resident tile holding -softplus(weight)
    # x_ref, y_ref: (D, TN) lane-dense feature-major tiles
    # o_ref: (1, TN) lane-dense output tile
    diff = x_ref[...] - y_ref[...]                                  # VPU
    neg_wdist = jnp.sum(diff * diff * w_ref[...],                   # VPU + broadcast
                        axis=0, keepdims=True)                      # 3-sublane XLU reduce
    o_ref[...] = jnp.exp(neg_wdist)                                 # EUP (weight pre-negated)


def rbf_distance_feature_major(xt, yt, weight, *, tile_n=128 * 1024):
    """Fast path. xt, yt: (D, N) float32 feature-major; weight: (1, D).

    Returns (1, N) float32 of exp(-sum_d softplus(w_d) * (x_d - y_d)^2).
    """
    D, N = xt.shape
    assert yt.shape == (D, N) and weight.shape == (1, D)

    # Hoist softplus out of the per-tile body and pre-negate it.
    w_neg = (-jax.nn.softplus(weight.astype(jnp.float32))).reshape(D, 1)

    # Lane tile: multiple of 128, as large as requested, but split so the
    # parallel grid has >=2 steps when N allows it (keeps both v7x TCs busy).
    n128 = _round_up(max(N, 1), 128)
    tn = min(tile_n, n128)
    if n128 >= 2 * 128:
        tn = min(tn, _round_up(pl.cdiv(n128, 2), 128))
    grid = (pl.cdiv(N, tn),)

    # VMEM budget: a (D, tn) f32 block is stored sublane-padded to (8, tn).
    # 2 inputs x 2 buffers + 1 output x 2 buffers (worst-case padding) + slack.
    block_bytes = 8 * tn * 4
    vmem_needed = 2 * 2 * block_bytes + 2 * block_bytes + (1 << 20)
    vmem_limit = min(int(vmem_needed * 5 // 4), 60 * 1024 * 1024)

    return pl.pallas_call(
        _rbf_kernel,
        out_shape=jax.ShapeDtypeStruct((1, N), jnp.float32),
        grid_spec=pltpu.PrefetchScalarGridSpec(
            num_scalar_prefetch=0,
            grid=grid,
            in_specs=[
                # -softplus(weight): full (D, 1) block, constant index -> resident.
                pl.BlockSpec((D, 1), lambda i: (0, 0)),
                # lane-dense sample tiles; last grid step may be a partial block.
                pl.BlockSpec((D, tn), lambda i: (0, i)),
                pl.BlockSpec((D, tn), lambda i: (0, i)),
            ],
            out_specs=pl.BlockSpec((1, tn), lambda i: (0, i)),
        ),
        compiler_params=pltpu.CompilerParams(
            dimension_semantics=("parallel",),
            vmem_limit_bytes=vmem_limit,
        ),
        cost_estimate=pl.CostEstimate(
            flops=5 * N * D,
            transcendentals=N,
            bytes_accessed=(2 * N * D + N + D) * 4,
        ),
    )(w_neg, xt, yt)


def rbf_distance(x, y, weight, *, tile_n=128 * 1024):
    """Module-compatible path. x, y: (N, D); weight: (1, D). Returns (N, 1).

    The only non-kernel cost left is the (N, D) -> (D, N) transpose below;
    callers that already hold feature-major coordinates should use
    rbf_distance_feature_major() and avoid it (per the performance review).
    """
    N, D = x.shape
    assert y.shape == (N, D) and weight.shape == (1, D)
    xt = jnp.asarray(x, jnp.float32).T   # layout plumbing only
    yt = jnp.asarray(y, jnp.float32).T
    out = rbf_distance_feature_major(xt, yt, weight, tile_n=tile_n)
    return out.reshape(N, 1)             # (1, N) -> (N, 1) is a free reshape


def rbf_reference(x, y, weight):
    w = jax.nn.softplus(weight)
    wd = jnp.sum((x - y) ** 2 * w, axis=1, keepdims=True)
    return jnp.exp(-wd)


if __name__ == "__main__":
    dim = 3
    N = 200  # deliberately NOT a multiple of 128 to exercise the partial tail block

    # Deterministic parameter init, matching nn.init.constant_(self.weight, 1)
    weight = jnp.ones((1, dim), dtype=jnp.float32)

    key = jax.random.PRNGKey(0)
    kx, ky = jax.random.split(key)
    x = jax.random.normal(kx, (N, dim), dtype=jnp.float32)
    y = jax.random.normal(ky, (N, dim), dtype=jnp.float32)

    ref = rbf_reference(x, y, weight)

    # Module-compatible (N, D) boundary.
    out = jax.block_until_ready(rbf_distance(x, y, weight))
    assert out.shape == (N, 1)
    assert jnp.allclose(out, ref, atol=1e-5, rtol=1e-5), "mismatch vs reference"

    # Fast path: producer supplies feature-major (D, N) coordinates directly
    # (no transpose / pad copies anywhere).
    out_fm = jax.block_until_ready(rbf_distance_feature_major(x.T, y.T, weight))
    assert jnp.allclose(out_fm.reshape(N, 1), ref, atol=1e-5, rtol=1e-5), "fast-path mismatch"

    print("KERNEL_OK")
</pallas_src>

<mosaic_0001>
module attributes {stable_mosaic.version = 11 : i64} {
  func.func @_rbf_kernel(%arg0: i32, %arg1: memref<3x1xf32, #tpu.memory_space<vmem>>, %arg2: memref<3x128xf32, #tpu.memory_space<vmem>>, %arg3: memref<3x128xf32, #tpu.memory_space<vmem>>, %arg4: memref<1x128xf32, #tpu.memory_space<vmem>>) attributes {dimension_semantics = [#tpu.dimension_semantics<parallel>], iteration_bounds = array<i64: 2>, scalar_prefetch = 0 : i64, scratch_operands = 0 : i64, tpu.core_type = #tpu.core_type<tc>, window_params = [{pipeline_mode = #tpu.pipeline_mode<synchronous>, transform_indices = @transform_0, window_bounds = array<i64: 3, 1>}, {transform_indices = @transform_1, window_bounds = array<i64: 3, 128>}, {transform_indices = @transform_2, window_bounds = array<i64: 3, 128>}, {transform_indices = @transform_3, window_bounds = array<i64: 1, 128>}]} {
    %c0 = arith.constant 0 : index
    %c0_0 = arith.constant 0 : index
    %0 = vector.load %arg2[%c0, %c0_0] : memref<3x128xf32, #tpu.memory_space<vmem>>, vector<3x128xf32>
    %c0_1 = arith.constant 0 : index
    %c0_2 = arith.constant 0 : index
    %1 = vector.load %arg3[%c0_1, %c0_2] : memref<3x128xf32, #tpu.memory_space<vmem>>, vector<3x128xf32>
    %2 = arith.subf %0, %1 : vector<3x128xf32>
    %3 = arith.mulf %2, %2 : vector<3x128xf32>
    %c0_3 = arith.constant 0 : index
    %c0_4 = arith.constant 0 : index
    %4 = vector.load %arg1[%c0_3, %c0_4] : memref<3x1xf32, #tpu.memory_space<vmem>>, vector<3x1xf32>
    %5 = vector.broadcast %4 : vector<3x1xf32> to vector<3x128xf32>
    %6 = arith.mulf %3, %5 : vector<3x128xf32>
    %cst = arith.constant dense<0.000000e+00> : vector<128xf32>
    %7 = vector.multi_reduction <add>, %6, %cst [0] : vector<3x128xf32> to vector<128xf32>
    %8 = vector.shape_cast %7 : vector<128xf32> to vector<1x128xf32>
    %9 = math.exp %8 : vector<1x128xf32>
    %c0_5 = arith.constant 0 : index
    %c0_6 = arith.constant 0 : index
    %10 = vector.load %arg4[%c0_5, %c0_6] : memref<1x128xf32, #tpu.memory_space<vmem>>, vector<1x128xf32>
    tpu.vector_store %arg4[%c0_5, %c0_6], %9 {strides = array<i32>} : memref<1x128xf32, #tpu.memory_space<vmem>>, vector<1x128xf32>,
    return
  }
  func.func @transform_0(%arg0: i32) -> (i32, i32) {
    %c0_i32 = arith.constant 0 : i32
    %c0_i32_0 = arith.constant 0 : i32
    %c0_i32_1 = arith.constant 0 : i32
    return %c0_i32, %c0_i32_0 : i32, i32
  }
  func.func @transform_1(%arg0: i32) -> (i32, i32) {
    %c0_i32 = arith.constant 0 : i32
    %c0_i32_0 = arith.constant 0 : i32
    return %c0_i32, %arg0 : i32, i32
  }
  func.func @transform_2(%arg0: i32) -> (i32, i32) {
    %c0_i32 = arith.constant 0 : i32
    %c0_i32_0 = arith.constant 0 : i32
    return %c0_i32, %arg0 : i32, i32
  }
  func.func @transform_3(%arg0: i32) -> (i32, i32) {
    %c0_i32 = arith.constant 0 : i32
    %c0_i32_0 = arith.constant 0 : i32
    return %c0_i32, %arg0 : i32, i32
  }
}

</mosaic_0001>

<llo_original>
// kernel: tpu_custom_call.1
$region0: #{tpu_custom_call.1}
  #allocation0 [shape = 'u32[]', space=smem, size = 0x4, offset = 0x4, fixed_abs, tag = 'smem constant byte address 0x4 - core index']
  #allocation1 [shape = 'u32[72,128]{1,0:T(1,128)}', space=vmem, size = 0x9000, scoped, tag = 'internal scratch']
  %s0 = inlined_call_operand.vmem [shape: f32[3,1], index: 0, kind: input, shape index: {}]
  %s1 = inlined_call_operand.hbm [shape: f32[3,200], index: 1, kind: input, shape index: {}]
  %s2 = inlined_call_operand.hbm [shape: f32[3,200], index: 2, kind: input, shape index: {}]
  %s3 = inlined_call_operand.hbm [shape: f32[1,200], index: 3, kind: output, shape index: {}]
  %s4 = sld [smem:[#allocation0]]
  $region53: #{tpu_custom_call.1} parent=0
    _
  %s6 = ssub.s32 1, %s4
  %s7 = scalar_select 0, %s6, %s4
  $region1: #{tpu_custom_call.1} parent=0
    #allocation2 [shape = 'u8[4096]{0}', space=vmem, size = 0x1000, scoped, tag = 'input window, operand 1']
    #allocation3 [shape = 's32[2]{0}', space=sflag, size = 0x8, scoped, tag = 'scoped memory for tpu_custom_call.1']
    #allocation4 [shape = 's32[2]{0}', space=sflag, size = 0x8, scoped, tag = 'scoped memory for tpu_custom_call.1']
    #allocation5 [shape = 'u8[4096]{0}', space=vmem, size = 0x1000, scoped, tag = 'input window, operand 2']
    #allocation6 [shape = 's32[2]{0}', space=sflag, size = 0x8, scoped, tag = 'scoped memory for tpu_custom_call.1']
    #allocation7 [shape = 'u8[1024]{0}', space=vmem, size = 0x400, scoped, tag = 'output window, operand 0']
    %8 = vsyncpa [#allocation3], 0
    %s9 = scalar_lea.sflag [#allocation3], 1
    %10 = vsyncpa %s9, 0
    %11 = vsyncpa [#allocation6], 0
    %s12 = scalar_lea.sflag [#allocation6], 1
    %13 = vsyncpa %s12, 0
    %14 = vsyncpa [#allocation4], 0
    %s15 = scalar_lea.sflag [#allocation4], 1
    %16 = vsyncpa %s15, 0
    loop: start=0, step=1, limit=4
    $region2: #{tpu_custom_call.1} parent=1 // loop_pre_header
      _
    $region3: #{tpu_custom_call.1} parent=1 // loop_header
      %s18 = sphi 0, %s22
      %p19 = scmp.ge.s32.totalorder %s18, 4
      %s26 = sphi 0, %s26
      %s28 = sphi 0, %s26
      %s29 = sphi 0, %s28
      %s43 = sphi 0, %s29
      %s49 = sphi 0, %s51
      %s52 = sphi 0, %s49
      %s53 = sphi 0, %s52
      %s69 = sphi 0, %s53
      %s75 = sphi 0, %s77
      %s78 = sphi 0, %s75
      %s79 = sphi 0, %s78
      %s95 = sphi 0, %s79
      %s101 = sphi 0, %s103
      %s104 = sphi 0, %s101
      %s105 = sphi 0, %s104
      %s121 = sphi 0, %s105
    $region4: #{tpu_custom_call.1} parent=1 // loop_header_branch
      %21 = sbr.rel (%p19) target = $region8
    $region5: #{tpu_custom_call.1} parent=1 // loop_body
      %s23 = ssub.s32 %s18, 1
      %s24 = ssub.s32 %s18, 2
      %s25 = sadd.s32 %s18, 1
      %s27 = sadd.s32 %s26, 1
      %p30 = scmp.eq.s32.totalorder %s18, 1
      %p31 = scmp.ne.s32.totalorder %s26, %s28
      %p32 = scmp.eq.s32.totalorder %s18, 0
      %p33 = por %p31, %p32
      %p34 = scmp.ne.s32.totalorder %s26, %s28
      %p35 = scmp.eq.s32.totalorder %s23, 1
      %p36 = por %p34, %p35
      %p37 = scmp.ne.s32.totalorder %s28, %s29
      %p38 = scmp.eq.s32.totalorder %s23, 0
      %p39 = por %p37, %p38
      %p40 = scmp.ne.s32.totalorder %s28, %s29
      %p41 = scmp.eq.s32.totalorder %s24, 1
      %p42 = por %p40, %p41
      %p44 = scmp.ne.s32.totalorder %s29, %s43
      %p45 = scmp.eq.s32.totalorder %s24, 0
      %p46 = por %p44, %p45
      %s47 = ssub.s32 %s18, %s25
      %p48 = scmp.eq.s32.totalorder %s47, 0
      %s50 = sadd.s32 %s49, 1
      %s51 = scalar_select %p48, %s49, %s50
      %p54 = pneg %p48
      %p55 = scmp.eq.s32.totalorder %s18, 1
      %p56 = por %p54, %p55
      %p57 = scmp.ne.s32.totalorder %s49, %s52
      %p58 = scmp.eq.s32.totalorder %s18, 0
      %p59 = por %p57, %p58
      %p60 = scmp.ne.s32.totalorder %s49, %s52
      %p61 = scmp.eq.s32.totalorder %s23, 1
      %p62 = por %p60, %p61
      %p63 = scmp.ne.s32.totalorder %s52, %s53
      %p64 = scmp.eq.s32.totalorder %s23, 0
      %p65 = por %p63, %p64
      %p66 = scmp.ne.s32.totalorder %s52, %s53
      %p67 = scmp.eq.s32.totalorder %s24, 1
      %p68 = por %p66, %p67
      %p70 = scmp.ne.s32.totalorder %s53, %s69
      %p71 = scmp.eq.s32.totalorder %s24, 0
      %p72 = por %p70, %p71
      %s73 = ssub.s32 %s18, %s25
      %p74 = scmp.eq.s32.totalorder %s73, 0
      %s76 = sadd.s32 %s75, 1
      %s77 = scalar_select %p74, %s75, %s76
      %p80 = pneg %p74
      %p81 = scmp.eq.s32.totalorder %s18, 1
      %p82 = por %p80, %p81
      %p83 = scmp.ne.s32.totalorder %s75, %s78
      %p84 = scmp.eq.s32.totalorder %s18, 0
      %p85 = por %p83, %p84
      %p86 = scmp.ne.s32.totalorder %s75, %s78
      %p87 = scmp.eq.s32.totalorder %s23, 1
      %p88 = por %p86, %p87
      %p89 = scmp.ne.s32.totalorder %s78, %s79
      %p90 = scmp.eq.s32.totalorder %s23, 0
      %p91 = por %p89, %p90
      %p92 = scmp.ne.s32.totalorder %s78, %s79
      %p93 = scmp.eq.s32.totalorder %s24, 1
      %p94 = por %p92, %p93
      %p96 = scmp.ne.s32.totalorder %s79, %s95
      %p97 = scmp.eq.s32.totalorder %s24, 0
      %p98 = por %p96, %p97
      %s99 = ssub.s32 %s18, %s25
      %p100 = scmp.eq.s32.totalorder %s99, 0
      %s102 = sadd.s32 %s101, 1
      %s103 = scalar_select %p100, %s101, %s102
      %p106 = pneg %p100
      %p107 = scmp.eq.s32.totalorder %s18, 1
      %p108 = por %p106, %p107
      %p109 = scmp.ne.s32.totalorder %s101, %s104
      %p110 = scmp.eq.s32.totalorder %s18, 0
      %p111 = por %p109, %p110
      %p112 = scmp.ne.s32.totalorder %s101, %s104
      %p113 = scmp.eq.s32.totalorder %s23, 1
      %p114 = por %p112, %p113
      %p115 = scmp.ne.s32.totalorder %s104, %s105
      %p116 = scmp.eq.s32.totalorder %s23, 0
      %p117 = por %p115, %p116
      %p118 = scmp.ne.s32.totalorder %s104, %s105
      %p119 = scmp.eq.s32.totalorder %s24, 1
      %p120 = por %p118, %p119
      %p122 = scmp.ne.s32.totalorder %s105, %s121
      %p123 = scmp.eq.s32.totalorder %s24, 0
      %p124 = por %p122, %p123
      %p125 = scmp.le.s32.totalorder 1, %s18
      %p126 = scmp.lt.s32.totalorder %s18, 3
      %p127 = pnand %p125, %p126
      %p128 = pneg %p127
      // Predicated region
      $region9: #{tpu_custom_call.1} parent=5 // pred_check
        _
      $region10: #{tpu_custom_call.1} parent=5 // pred_check_branch
        %130 = sbr.rel (%p127) target = $region12
      $region11: #{tpu_custom_call.1} parent=5 // pred_region
        %s131 = ssub.s32 %s18, 1
        // Predicated region
        $region13: #{tpu_custom_call.1} parent=11 // pred_check
          %p132 = pneg %p39
        $region14: #{tpu_custom_call.1} parent=11 // pred_check_branch
          %134 = sbr.rel (%p132) target = $region16
        $region15: #{tpu_custom_call.1} parent=11 // pred_region
          _
        $region16: #{tpu_custom_call.1} parent=11 // pred_fallthru
          _
      $region12: #{tpu_custom_call.1} parent=5 // pred_fallthru
        _
      %p135 = scmp.lt.s32.totalorder %s18, 2
      // Predicated region
      $region17: #{tpu_custom_call.1} parent=5 // pred_check
        %p136 = pneg %p135
      $region18: #{tpu_custom_call.1} parent=5 // pred_check_branch
        %138 = sbr.rel (%p136) target = $region20
      $region19: #{tpu_custom_call.1} parent=5 // pred_region
        // Predicated region
        $region21: #{tpu_custom_call.1} parent=19 // pred_check
          %p139 = pneg %p59
        $region22: #{tpu_custom_call.1} parent=19 // pred_check_branch
          %141 = sbr.rel (%p139) target = $region24
        $region23: #{tpu_custom_call.1} parent=19 // pred_region
          %s142 = sand.u32 %s49, 1
          %s143 = scalar_lea.sflag [#allocation3], %s142
          %s144 = sand.u32 %s49, 1
          %s145 = smul.addr %s144, 4
          %s146 = scalar_lea.vmem [#allocation2], %s145
          %148 = vsyncadd %s143, 0
          %s149 = smul.addr %s18, 4
          %s150 = scalar_lea.hbm %s1, %s149
          %s152 = sshll.u32 %s150, 4
          %s153 = int_to_ptr.hbm [resolvable:$true] %s152
          %s154 = sshll.u32 %s146, 4
          %s155 = int_to_ptr.vmem [resolvable:$true] %s154
          %157 = dma.hbm_to_vmem [thread:$0]  %s153, 64, %s155, %s143
        $region24: #{tpu_custom_call.1} parent=19 // pred_fallthru
          _
        // Predicated region
        $region25: #{tpu_custom_call.1} parent=19 // pred_check
          %p158 = pneg %p85
        $region26: #{tpu_custom_call.1} parent=19 // pred_check_branch
          %160 = sbr.rel (%p158) target = $region28
        $region27: #{tpu_custom_call.1} parent=19 // pred_region
          %s161 = sand.u32 %s75, 1
          %s162 = scalar_lea.sflag [#allocation6], %s161
          %s163 = sand.u32 %s75, 1
          %s164 = smul.addr %s163, 4
          %s165 = scalar_lea.vmem [#allocation5], %s164
          %167 = vsyncadd %s162, 0
          %s168 = smul.addr %s18, 4
          %s169 = scalar_lea.hbm %s2, %s168
          %s171 = sshll.u32 %s169, 4
          %s172 = int_to_ptr.hbm [resolvable:$true] %s171
          %s173 = sshll.u32 %s165, 4
          %s174 = int_to_ptr.vmem [resolvable:$true] %s173
          %176 = dma.hbm_to_vmem [thread:$0]  %s172, 64, %s174, %s162
        $region28: #{tpu_custom_call.1} parent=19 // pred_fallthru
          _
      $region20: #{tpu_custom_call.1} parent=5 // pred_fallthru
        _
      %p177 = scmp.le.s32.totalorder 1, %s18
      %p178 = scmp.lt.s32.totalorder %s18, 3
      %p179 = pnand %p177, %p178
      %p180 = pneg %p179
      // Predicated region
      $region29: #{tpu_custom_call.1} parent=5 // pred_check
        _
      $region30: #{tpu_custom_call.1} parent=5 // pred_check_branch
        %182 = sbr.rel (%p179) target = $region32
      $region31: #{tpu_custom_call.1} parent=5 // pred_region
        %s183 = ssub.s32 %s18, 1
        %s184 = sand.u32 %s52, 1
        %s185 = scalar_lea.sflag [#allocation3], %s184
        %s186 = sand.u32 %s52, 1
        %s187 = smul.addr %s186, 4
        %s188 = scalar_lea.vmem [#allocation2], %s187
        // Predicated region
        $region33: #{tpu_custom_call.1} parent=31 // pred_check
          %p189 = pneg %p65
        $region34: #{tpu_custom_call.1} parent=31 // pred_check_branch
          %191 = sbr.rel (%p189) target = $region36
        $region35: #{tpu_custom_call.1} parent=31 // pred_region
          %193 = dma.done %s185, 64
        $region36: #{tpu_custom_call.1} parent=31 // pred_fallthru
          _
        %s194 = sand.u32 %s78, 1
        %s195 = scalar_lea.sflag [#allocation6], %s194
        %s196 = sand.u32 %s78, 1
        %s197 = smul.addr %s196, 4
        %s198 = scalar_lea.vmem [#allocation5], %s197
        // Predicated region
        $region37: #{tpu_custom_call.1} parent=31 // pred_check
          %p199 = pneg %p91
        $region38: #{tpu_custom_call.1} parent=31 // pred_check_branch
          %201 = sbr.rel (%p199) target = $region40
        $region39: #{tpu_custom_call.1} parent=31 // pred_region
          %203 = dma.done %s195, 64
        $region40: #{tpu_custom_call.1} parent=31 // pred_fallthru
          _
        %p204 = pneg %p39
        %p205 = pneg %p36
        %s206 = sand.u32 %s52, 1
        %s207 = scalar_lea.sflag [#allocation3], %s206
        %s208 = sand.u32 %s52, 1
        %s209 = smul.addr %s208, 4
        %s210 = scalar_lea.vmem [#allocation2], %s209
        %p211 = pneg %p65
        %p212 = pneg %p62
        %s213 = sand.u32 %s78, 1
        %s214 = scalar_lea.sflag [#allocation6], %s213
        %s215 = sand.u32 %s78, 1
        %s216 = smul.addr %s215, 4
        %s217 = scalar_lea.vmem [#allocation5], %s216
        %p218 = pneg %p91
        %p219 = pneg %p88
        %p220 = pneg %p117
        %p221 = pneg %p114
        %s222 = sand.u32 %s104, 1
        %s223 = scalar_lea.sflag [#allocation4], %s222
        %s224 = sand.u32 %s104, 1
        %s225 = scalar_lea.vmem [#allocation7], %s224
        %v226 = vld [vmem:[%s188] sm:$0x7]
        %v227 = vld [vmem:[%s198] sm:$0x7]
        %v228 = vsub.f32 %v226, %v227
        %v229 = vmul.f32 %v228, %v228
        %v230 = vld [vmem:[%s0] sm:$0x7]
        %232 = vset.pattern.permute.xlu0 0
        %233 = vperm.xlu0 %232, %v230
        %v234 = vpop.permute.xlu0 %233
        %v236 = vmul.f32 %v229, %v234
        %vm237 = vcmask 1042432
        %v238 = vsel %vm237, %v236, 0.0
        %v239 = vrot.slane %v238, 4
        %v240 = vadd.f32 %v238, %v239
        %v241 = vrot.slane %v240, 2
        %v242 = vadd.f32 %v240, %v241
        %v243 = vrot.slane %v242, 1
        %v244 = vadd.f32 %v242, %v243
        %v245 = vmul.f32 %v244, 1.442695
        %v246 = vpow.pop %v245
        %247 = vst [vmem:[%s225] sm:$0x1] %v246
        %s248 = sand.u32 %s104, 1
        %s249 = scalar_lea.sflag [#allocation4], %s248
        %s250 = sand.u32 %s104, 1
        %s251 = scalar_lea.vmem [#allocation7], %s250
        // Predicated region
        $region41: #{tpu_custom_call.1} parent=31 // pred_check
          %p252 = pneg %p114
        $region42: #{tpu_custom_call.1} parent=31 // pred_check_branch
          %254 = sbr.rel (%p252) target = $region44
        $region43: #{tpu_custom_call.1} parent=31 // pred_region
          %256 = vsyncadd %s249, 0
          %s257 = scalar_lea.hbm %s3, %s23
          %s259 = sshll.u32 %s251, 4
          %s260 = int_to_ptr.vmem [resolvable:$true] %s259
          %s261 = sshll.u32 %s257, 4
          %s262 = int_to_ptr.hbm [resolvable:$true] %s261
          %264 = dma.vmem_to_hbm [thread:$0]  %s260, 16, %s262, %s249
        $region44: #{tpu_custom_call.1} parent=31 // pred_fallthru
          _
      $region32: #{tpu_custom_call.1} parent=5 // pred_fallthru
        _
      %p265 = scmp.le.s32.totalorder 2, %s18
      // Predicated region
      $region45: #{tpu_custom_call.1} parent=5 // pred_check
        %p266 = pneg %p265
      $region46: #{tpu_custom_call.1} parent=5 // pred_check_branch
        %268 = sbr.rel (%p266) target = $region48
      $region47: #{tpu_custom_call.1} parent=5 // pred_region
        %s269 = ssub.s32 %s18, 2
        // Predicated region
        $region49: #{tpu_custom_call.1} parent=47 // pred_check
          %p270 = pneg %p120
        $region50: #{tpu_custom_call.1} parent=47 // pred_check_branch
          %272 = sbr.rel (%p270) target = $region52
        $region51: #{tpu_custom_call.1} parent=47 // pred_region
          %s273 = sand.u32 %s105, 1
          %s274 = scalar_lea.sflag [#allocation4], %s273
          %s275 = sand.u32 %s105, 1
          %s276 = scalar_lea.vmem [#allocation7], %s275
          %278 = dma.done %s274, 16
        $region52: #{tpu_custom_call.1} parent=47 // pred_fallthru
          _
      $region48: #{tpu_custom_call.1} parent=5 // pred_fallthru
        _
    $region6: #{tpu_custom_call.1} parent=1 // loop_footer
      %s22 = sadd.s32 1, %s18
    $region7: #{tpu_custom_call.1} parent=1 // loop_footer_branch
      %17 = sbr.rel target = $region3
    $region8: #{tpu_custom_call.1} parent=1 // loop_exit
      _
    %279 = vsyncpa [#allocation3], 1
    %s280 = scalar_lea.sflag [#allocation3], 1
    %281 = vsyncpa %s280, 1
    %282 = vsyncpa [#allocation6], 1
    %s283 = scalar_lea.sflag [#allocation6], 1
    %284 = vsyncpa %s283, 1
    %285 = vsyncpa [#allocation4], 1
    %s286 = scalar_lea.sflag [#allocation4], 1
    %287 = vsyncpa %s286, 1

</llo_original>
